<compile_context>
chip_gen: v6e
topology: v6e:2x2x1
jax: 0.10.0
libtpu: 0.0.40
codegen_flags: <defaults>
</compile_context>

<pallas_src>
import functools

import jax
import jax.numpy as jnp
from jax.experimental import pallas as pl
from jax.experimental.pallas import tpu as pltpu


def _round_up(n, m):
    return ((n + m - 1) // m) * m


def _pick_batch_tile(padded8, block_batch, min_blocks=2):
    """Pick a batch tile (multiple of 8) minimizing grid steps then padding.

    `padded8` is the batch rounded up to a multiple of 8.  When the batch is
    large enough, the tile is capped so at least `min_blocks` grid steps exist
    (keeps both v7x TensorCores busy through the "parallel" batch axis).
    """
    cap = min(_round_up(max(block_batch, 8), 8), padded8)
    if padded8 >= min_blocks * 8:
        cap = min(cap, max(8, (padded8 // min_blocks) // 8 * 8))
    best_score, best_tm = None, 8
    for tm in range(8, cap + 1, 8):
        nblk = -(-padded8 // tm)                 # grid steps
        score = (nblk, nblk * tm, -tm)           # fewer steps, less pad, bigger tile
        if best_score is None or score < best_score:
            best_score, best_tm = score, tm
    return best_tm


def mlp_kernel(x_ref, w1_ref, b1_ref, w2_ref, b2_ref, w3_ref, b3_ref, o_ref,
               *, compute_dtype):
    x = x_ref[...]                                              # (TM, in_dim)

    # fc1 + ReLU  (MXU matmul, f32 accumulation; bias/ReLU in f32 on the VPU)
    h1 = jnp.dot(x, w1_ref[...], preferred_element_type=jnp.float32)
    h1 = jnp.maximum(h1 + b1_ref[...], 0.0)

    # fc2 + ReLU
    h2 = jnp.dot(h1.astype(compute_dtype), w2_ref[...],
                 preferred_element_type=jnp.float32)
    h2 = jnp.maximum(h2 + b2_ref[...], 0.0)

    # fc3
    out = jnp.dot(h2.astype(compute_dtype), w3_ref[...],
                  preferred_element_type=jnp.float32)
    o_ref[...] = (out + b3_ref[...]).astype(o_ref.dtype)        # (TM, out_dim)


def mlp_forward(x, w1, b1, w2, b2, w3, b3, *, block_batch=1024,
                compute_dtype=jnp.float32, min_batch_blocks=2):
    batch, in_dim = x.shape
    out_dim = w3.shape[1]

    # Batch tiling: pad only to a multiple of 8, then pick a tile that
    # (near-)divides the padded batch to avoid wasted tail work.
    padded8 = _round_up(batch, 8)
    tm = _pick_batch_tile(padded8, block_batch, min_batch_blocks)
    padded = _round_up(padded8, tm)
    if padded != batch:
        x = jnp.pad(x, ((0, padded - batch), (0, 0)))
    num_blocks = padded // tm

    # bf16 (or other) compute dtype for the heavy HBM streams; biases stay f32
    # so bias+ReLU run on the f32 MXU accumulator inside the kernel.
    x = x.astype(compute_dtype)
    w1c, w2c, w3c = (w.astype(compute_dtype) for w in (w1, w2, w3))
    b1f, b2f, b3f = (b.astype(jnp.float32) for b in (b1, b2, b3))

    # Weights / biases: constant index_map -> VMEM-resident, fetched once.
    def resident(arr):
        return pl.BlockSpec(arr.shape, lambda i: (0,) * arr.ndim)

    kernel = functools.partial(mlp_kernel, compute_dtype=compute_dtype)

    out = pl.pallas_call(
        kernel,
        out_shape=jax.ShapeDtypeStruct((padded, out_dim), jnp.float32),
        grid=(num_blocks,),
        in_specs=[
            pl.BlockSpec((tm, in_dim), lambda i: (i, 0)),   # x: tiled over batch
            resident(w1c), resident(b1f),
            resident(w2c), resident(b2f),
            resident(w3c), resident(b3f),
        ],
        out_specs=pl.BlockSpec((tm, out_dim), lambda i: (i, 0)),
        compiler_params=pltpu.CompilerParams(
            dimension_semantics=("parallel",)),
    )(x, w1c, b1f, w2c, b2f, w3c, b3f)

    return out[:batch]


def init_params(key, input_num, hidden_dim, output_dim):
    # Deterministic init mimicking nn.Linear's uniform(-1/sqrt(fan_in), ...).
    ks = jax.random.split(key, 6)

    def linear(kw, kb, fan_in, fan_out):
        bound = 1.0 / jnp.sqrt(fan_in)
        w = jax.random.uniform(kw, (fan_in, fan_out), jnp.float32, -bound, bound)
        b = jax.random.uniform(kb, (1, fan_out), jnp.float32, -bound, bound)
        return w, b

    w1, b1 = linear(ks[0], ks[1], input_num, hidden_dim)
    w2, b2 = linear(ks[2], ks[3], hidden_dim, hidden_dim)
    w3, b3 = linear(ks[4], ks[5], hidden_dim, output_dim)
    return w1, b1, w2, b2, w3, b3


if __name__ == "__main__":
    input_num, hidden_dim, output_dim = 16, 32, 8

    key = jax.random.PRNGKey(0)
    kx, kx2, kp = jax.random.split(key, 3)

    params = init_params(kp, input_num, hidden_dim, output_dim)
    w1, b1, w2, b2, w3, b3 = params

    def ref_fn(xx):
        h = jnp.maximum(xx @ w1 + b1, 0.0)
        h = jnp.maximum(h @ w2 + b2, 0.0)
        return h @ w3 + b3

    # Small batch (single grid point, whole problem in one VMEM tile).
    x = jax.random.normal(kx, (4, input_num), jnp.float32)
    out = jax.block_until_ready(mlp_forward(x, *params))
    assert out.shape == (4, output_dim)
    assert jnp.allclose(out, ref_fn(x), atol=1e-5, rtol=1e-5)

    # Larger, non-multiple batch: exercises the batch-tiled grid + tail path
    # (batch=300 -> padded to 304, tile 152, 2 grid blocks).
    x2 = jax.random.normal(kx2, (300, input_num), jnp.float32)
    out2 = jax.block_until_ready(mlp_forward(x2, *params))
    assert out2.shape == (300, output_dim)
    assert jnp.allclose(out2, ref_fn(x2), atol=1e-5, rtol=1e-5)

    # bf16 compute path: halves the dominant x/weight HBM streams; f32 accum.
    out3 = jax.block_until_ready(
        mlp_forward(x2, *params, compute_dtype=jnp.bfloat16))
    assert out3.shape == (300, output_dim)
    assert jnp.allclose(out3, ref_fn(x2), atol=1e-1, rtol=1e-1)

    print("KERNEL_OK")
</pallas_src>

<mosaic_0001>
module attributes {stable_mosaic.version = 11 : i64} {
  func.func @mlp_kernel(%arg0: i32, %arg1: memref<8x16xf32, #tpu.memory_space<vmem>>, %arg2: memref<16x32xf32, #tpu.memory_space<vmem>>, %arg3: memref<1x32xf32, #tpu.memory_space<vmem>>, %arg4: memref<32x32xf32, #tpu.memory_space<vmem>>, %arg5: memref<1x32xf32, #tpu.memory_space<vmem>>, %arg6: memref<32x8xf32, #tpu.memory_space<vmem>>, %arg7: memref<1x8xf32, #tpu.memory_space<vmem>>, %arg8: memref<8x8xf32, #tpu.memory_space<vmem>>) attributes {dimension_semantics = [#tpu.dimension_semantics<parallel>], iteration_bounds = array<i64: 1>, scalar_prefetch = 0 : i64, scratch_operands = 0 : i64, tpu.core_type = #tpu.core_type<tc>, window_params = [{transform_indices = @transform_0, window_bounds = array<i64: 8, 16>}, {pipeline_mode = #tpu.pipeline_mode<synchronous>, transform_indices = @transform_1, window_bounds = array<i64: 16, 32>}, {pipeline_mode = #tpu.pipeline_mode<synchronous>, transform_indices = @transform_2, window_bounds = array<i64: 1, 32>}, {pipeline_mode = #tpu.pipeline_mode<synchronous>, transform_indices = @transform_3, window_bounds = array<i64: 32, 32>}, {pipeline_mode = #tpu.pipeline_mode<synchronous>, transform_indices = @transform_4, window_bounds = array<i64: 1, 32>}, {pipeline_mode = #tpu.pipeline_mode<synchronous>, transform_indices = @transform_5, window_bounds = array<i64: 32, 8>}, {pipeline_mode = #tpu.pipeline_mode<synchronous>, transform_indices = @transform_6, window_bounds = array<i64: 1, 8>}, {transform_indices = @transform_7, window_bounds = array<i64: 8, 8>}]} {
    %c0 = arith.constant 0 : index
    %c0_0 = arith.constant 0 : index
    %0 = vector.load %arg1[%c0, %c0_0] : memref<8x16xf32, #tpu.memory_space<vmem>>, vector<8x16xf32>
    %c0_1 = arith.constant 0 : index
    %c0_2 = arith.constant 0 : index
    %1 = vector.load %arg2[%c0_1, %c0_2] : memref<16x32xf32, #tpu.memory_space<vmem>>, vector<16x32xf32>
    %cst = arith.constant dense<0.000000e+00> : vector<8x32xf32>
    %2 = tpu.matmul %0, %1, %cst {dimension_numbers = #tpu.dot_dimension_numbers<[1], [0], [0], [1], [0, 0, 1, 1], [], []>} : vector<8x16xf32>, vector<16x32xf32>, vector<8x32xf32> -> vector<8x32xf32>
    %c0_3 = arith.constant 0 : index
    %c0_4 = arith.constant 0 : index
    %3 = vector.load %arg3[%c0_3, %c0_4] : memref<1x32xf32, #tpu.memory_space<vmem>>, vector<1x32xf32>
    %4 = vector.broadcast %3 : vector<1x32xf32> to vector<8x32xf32>
    %5 = arith.addf %2, %4 : vector<8x32xf32>
    %cst_5 = arith.constant 0.000000e+00 : f32
    %6 = vector.broadcast %cst_5 : f32 to vector<8x32xf32>
    %7 = arith.maximumf %5, %6 : vector<8x32xf32>
    %c0_6 = arith.constant 0 : index
    %c0_7 = arith.constant 0 : index
    %8 = vector.load %arg4[%c0_6, %c0_7] : memref<32x32xf32, #tpu.memory_space<vmem>>, vector<32x32xf32>
    %cst_8 = arith.constant dense<0.000000e+00> : vector<8x32xf32>
    %9 = tpu.matmul %7, %8, %cst_8 {dimension_numbers = #tpu.dot_dimension_numbers<[1], [0], [0], [1], [0, 0, 1, 1], [], []>} : vector<8x32xf32>, vector<32x32xf32>, vector<8x32xf32> -> vector<8x32xf32>
    %c0_9 = arith.constant 0 : index
    %c0_10 = arith.constant 0 : index
    %10 = vector.load %arg5[%c0_9, %c0_10] : memref<1x32xf32, #tpu.memory_space<vmem>>, vector<1x32xf32>
    %11 = vector.broadcast %10 : vector<1x32xf32> to vector<8x32xf32>
    %12 = arith.addf %9, %11 : vector<8x32xf32>
    %cst_11 = arith.constant 0.000000e+00 : f32
    %13 = vector.broadcast %cst_11 : f32 to vector<8x32xf32>
    %14 = arith.maximumf %12, %13 : vector<8x32xf32>
    %c0_12 = arith.constant 0 : index
    %c0_13 = arith.constant 0 : index
    %15 = vector.load %arg6[%c0_12, %c0_13] : memref<32x8xf32, #tpu.memory_space<vmem>>, vector<32x8xf32>
    %cst_14 = arith.constant dense<0.000000e+00> : vector<8x8xf32>
    %16 = tpu.matmul %14, %15, %cst_14 {dimension_numbers = #tpu.dot_dimension_numbers<[1], [0], [0], [1], [0, 0, 1, 1], [], []>} : vector<8x32xf32>, vector<32x8xf32>, vector<8x8xf32> -> vector<8x8xf32>
    %c0_15 = arith.constant 0 : index
    %c0_16 = arith.constant 0 : index
    %17 = vector.load %arg7[%c0_15, %c0_16] : memref<1x8xf32, #tpu.memory_space<vmem>>, vector<1x8xf32>
    %18 = vector.broadcast %17 : vector<1x8xf32> to vector<8x8xf32>
    %19 = arith.addf %16, %18 : vector<8x8xf32>
    %c0_17 = arith.constant 0 : index
    %c0_18 = arith.constant 0 : index
    %20 = vector.load %arg8[%c0_17, %c0_18] : memref<8x8xf32, #tpu.memory_space<vmem>>, vector<8x8xf32>
    tpu.vector_store %arg8[%c0_17, %c0_18], %19 {strides = array<i32>} : memref<8x8xf32, #tpu.memory_space<vmem>>, vector<8x8xf32>,
    return
  }
  func.func @transform_0(%arg0: i32) -> (i32, i32) {
    %c0_i32 = arith.constant 0 : i32
    %c0_i32_0 = arith.constant 0 : i32
    return %arg0, %c0_i32 : i32, i32
  }
  func.func @transform_1(%arg0: i32) -> (i32, i32) {
    %c0_i32 = arith.constant 0 : i32
    %c0_i32_0 = arith.constant 0 : i32
    %c0_i32_1 = arith.constant 0 : i32
    return %c0_i32, %c0_i32_0 : i32, i32
  }
  func.func @transform_2(%arg0: i32) -> (i32, i32) {
    %c0_i32 = arith.constant 0 : i32
    %c0_i32_0 = arith.constant 0 : i32
    %c0_i32_1 = arith.constant 0 : i32
    return %c0_i32, %c0_i32_0 : i32, i32
  }
  func.func @transform_3(%arg0: i32) -> (i32, i32) {
    %c0_i32 = arith.constant 0 : i32
    %c0_i32_0 = arith.constant 0 : i32
    %c0_i32_1 = arith.constant 0 : i32
    return %c0_i32, %c0_i32_0 : i32, i32
  }
  func.func @transform_4(%arg0: i32) -> (i32, i32) {
    %c0_i32 = arith.constant 0 : i32
    %c0_i32_0 = arith.constant 0 : i32
    %c0_i32_1 = arith.constant 0 : i32
    return %c0_i32, %c0_i32_0 : i32, i32
  }
  func.func @transform_5(%arg0: i32) -> (i32, i32) {
    %c0_i32 = arith.constant 0 : i32
    %c0_i32_0 = arith.constant 0 : i32
    %c0_i32_1 = arith.constant 0 : i32
    return %c0_i32, %c0_i32_0 : i32, i32
  }
  func.func @transform_6(%arg0: i32) -> (i32, i32) {
    %c0_i32 = arith.constant 0 : i32
    %c0_i32_0 = arith.constant 0 : i32
    %c0_i32_1 = arith.constant 0 : i32
    return %c0_i32, %c0_i32_0 : i32, i32
  }
  func.func @transform_7(%arg0: i32) -> (i32, i32) {
    %c0_i32 = arith.constant 0 : i32
    %c0_i32_0 = arith.constant 0 : i32
    return %arg0, %c0_i32 : i32, i32
  }
}

</mosaic_0001>

<llo_original>
// kernel: tpu_custom_call.1
$region0: #{tpu_custom_call.1}
  #allocation0 [shape = 'u32[]', space=smem, size = 0x4, offset = 0x4, fixed_abs, tag = 'smem constant byte address 0x4 - core index']
  #allocation1 [shape = 'u32[144,128]{1,0:T(1,128)}', space=vmem, size = 0x12000, scoped, tag = 'internal scratch']
  %s0 = inlined_call_operand.vmem [shape: f32[8,16], index: 0, kind: input, shape index: {}]
  %s1 = inlined_call_operand.hbm [shape: f32[16,32], index: 1, kind: input, shape index: {}]
  %s2 = inlined_call_operand.vmem [shape: f32[1,32], index: 2, kind: input, shape index: {}]
  %s3 = inlined_call_operand.vmem [shape: f32[32,32], index: 3, kind: input, shape index: {}]
  %s4 = inlined_call_operand.hbm [shape: f32[1,32], index: 4, kind: input, shape index: {}]
  %s5 = inlined_call_operand.vmem [shape: f32[32,8], index: 5, kind: input, shape index: {}]
  %s6 = inlined_call_operand.vmem [shape: f32[1,8], index: 6, kind: input, shape index: {}]
  %s7 = inlined_call_operand.hbm [shape: f32[8,8], index: 7, kind: output, shape index: {}]
  %s8 = sld [smem:[#allocation0]]
  $region46: #{tpu_custom_call.1} parent=0
    _
  %s10 = ssub.s32 1, %s8
  %s11 = scalar_select 0, %s10, %s8
  $region1: #{tpu_custom_call.1} parent=0
    #allocation2 [shape = 'u8[8192]{0}', space=vmem, size = 0x2000, scoped, tag = 'input window, operand 1, single buffered']
    #allocation3 [shape = 's32[1]{0}', space=sflag, size = 0x4, scoped, tag = 'scoped memory for tpu_custom_call.1']
    #allocation4 [shape = 's32[1]{0}', space=sflag, size = 0x4, scoped, tag = 'scoped memory for tpu_custom_call.1']
    #allocation5 [shape = 'u8[512]{0}', space=vmem, size = 0x400, scoped, tag = 'input window, operand 4, single buffered']
    #allocation6 [shape = 's32[1]{0}', space=sflag, size = 0x4, scoped, tag = 'scoped memory for tpu_custom_call.1']
    #allocation7 [shape = 'u8[4096]{0}', space=vmem, size = 0x1000, scoped, tag = 'output window, operand 0, single buffered']
    %12 = vsyncpa [#allocation3], 0
    %13 = vsyncpa [#allocation6], 0
    %14 = vsyncpa [#allocation4], 0
    // Predicated region
    $region2: #{tpu_custom_call.1} parent=1 // pred_check
      _
    $region3: #{tpu_custom_call.1} parent=1 // pred_check_branch
      %16 = sbr.rel (0) target = $region5
    $region4: #{tpu_custom_call.1} parent=1 // pred_region
      _
    $region5: #{tpu_custom_call.1} parent=1 // pred_fallthru
      _
    // Predicated region
    $region6: #{tpu_custom_call.1} parent=1 // pred_check
      _
    $region7: #{tpu_custom_call.1} parent=1 // pred_check_branch
      %18 = sbr.rel (0) target = $region9
    $region8: #{tpu_custom_call.1} parent=1 // pred_region
      %s20 = ssub.s32 256, 256
      %21 = vsyncadd [#allocation3], %s20
      %s22 = sshll.u32 [#allocation2], 4
      %s23 = int_to_ptr.vmem [resolvable:$true] %s22
      %28 = dma.hbm_to_vmem [thread:$0]  %s1, 256, %s23, [#allocation3], 128, 128, 8
    $region9: #{tpu_custom_call.1} parent=1 // pred_fallthru
      _
    // Predicated region
    $region10: #{tpu_custom_call.1} parent=1 // pred_check
      _
    $region11: #{tpu_custom_call.1} parent=1 // pred_check_branch
      %30 = sbr.rel (0) target = $region13
    $region12: #{tpu_custom_call.1} parent=1 // pred_region
      _
    $region13: #{tpu_custom_call.1} parent=1 // pred_fallthru
      _
    // Predicated region
    $region14: #{tpu_custom_call.1} parent=1 // pred_check
      _
    $region15: #{tpu_custom_call.1} parent=1 // pred_check_branch
      %32 = sbr.rel (0) target = $region17
    $region16: #{tpu_custom_call.1} parent=1 // pred_region
      _
    $region17: #{tpu_custom_call.1} parent=1 // pred_fallthru
      _
    // Predicated region
    $region18: #{tpu_custom_call.1} parent=1 // pred_check
      _
    $region19: #{tpu_custom_call.1} parent=1 // pred_check_branch
      %34 = sbr.rel (0) target = $region21
    $region20: #{tpu_custom_call.1} parent=1 // pred_region
      %s36 = ssub.s32 16, 16
      %37 = vsyncadd [#allocation6], %s36
      %s39 = sshll.u32 [#allocation5], 4
      %s40 = int_to_ptr.vmem [resolvable:$true] %s39
      %42 = dma.hbm_to_vmem [thread:$0]  %s4, 16, %s40, [#allocation6]
    $region21: #{tpu_custom_call.1} parent=1 // pred_fallthru
      _
    // Predicated region
    $region22: #{tpu_custom_call.1} parent=1 // pred_check
      _
    $region23: #{tpu_custom_call.1} parent=1 // pred_check_branch
      %44 = sbr.rel (0) target = $region25
    $region24: #{tpu_custom_call.1} parent=1 // pred_region
      _
    $region25: #{tpu_custom_call.1} parent=1 // pred_fallthru
      _
    // Predicated region
    $region26: #{tpu_custom_call.1} parent=1 // pred_check
      _
    $region27: #{tpu_custom_call.1} parent=1 // pred_check_branch
      %46 = sbr.rel (0) target = $region29
    $region28: #{tpu_custom_call.1} parent=1 // pred_region
      _
    $region29: #{tpu_custom_call.1} parent=1 // pred_fallthru
      _
    // Predicated region
    $region30: #{tpu_custom_call.1} parent=1 // pred_check
      _
    $region31: #{tpu_custom_call.1} parent=1 // pred_check_branch
      %48 = sbr.rel (0) target = $region33
    $region32: #{tpu_custom_call.1} parent=1 // pred_region
      %49 = dma.done [#allocation3], 256
    $region33: #{tpu_custom_call.1} parent=1 // pred_fallthru
      _
    // Predicated region
    $region34: #{tpu_custom_call.1} parent=1 // pred_check
      _
    $region35: #{tpu_custom_call.1} parent=1 // pred_check_branch
      %51 = sbr.rel (0) target = $region37
    $region36: #{tpu_custom_call.1} parent=1 // pred_region
      %52 = dma.done [#allocation6], 16
    $region37: #{tpu_custom_call.1} parent=1 // pred_fallthru
      _
    %v53 = vld [vmem:[%s0] sm:$0xff]
    %v54 = vld [vmem:[#allocation2] sm:$0xff]
    %v55 = vld [vmem:[#allocation2 + $0x8] sm:$0xff]
    %v56 = vld [vmem:[%s2] sm:$0x1]
    %v58 = vlaneseq
    %v59 = vshrl.u32 %v58, 7
    %v60 = vsub.s32 0, %v59
    %v61 = vrot.slane %v56, %v60
    %vm63 = vcmask 130048
    %v65 = vsel %vm63, %v53, 0
    %67 = vmatprep.subr.mxu0 0.0
    %68 = vmatpush1.msra.mxu0 0.0
    %69 = vmatprep.subr.mxu0 0.0
    %70 = vmatpush1.msra.mxu0 0.0
    %71 = vmatprep.subr.mxu0 0.0
    %72 = vmatpush1.msra.mxu0 0.0
    %73 = vmatprep.subr.mxu0 0.0
    %74 = vmatpush1.msra.mxu0 0.0
    %75 = vmatprep.subr.mxu0 0.0
    %76 = vmatpush1.msra.mxu0 0.0
    %77 = vmatprep.subr.mxu0 0.0
    %78 = vmatpush1.msra.mxu0 0.0
    %79 = vmatprep.subr.mxu0 0.0
    %80 = vmatpush1.msra.mxu0 0.0
    %81 = vmatprep.subr.mxu0 0.0
    %82 = vmatpush1.msra.mxu0 0.0
    %83 = vmatprep.subr.mxu0 0.0
    %84 = vmatpush1.msra.mxu0 0.0
    %85 = vmatprep.subr.mxu0 0.0
    %86 = vmatpush1.msra.mxu0 0.0
    %87 = vmatprep.subr.mxu0 0.0
    %88 = vmatpush1.msra.mxu0 0.0
    %89 = vmatprep.subr.mxu0 0.0
    %90 = vmatpush1.msra.mxu0 0.0
    %91 = vmatprep.subr.mxu0 0.0
    %92 = vmatpush1.msra.mxu0 0.0
    %93 = vmatprep.subr.mxu0 0.0
    %94 = vmatpush1.msra.mxu0 0.0
    %95 = vmatprep.subr.mxu0 0.0
    %96 = vmatpush1.msra.mxu0 %v55
    %97 = vmatprep.subr.mxu0 0.0
    %98 = vmatpush1.msra.mxu0 %v54
    %99 = vmatprep.subr.mxu0 0.0
    %100 = vmatpush2.msra.mxu0 0.0
    %101 = vmatprep.subr.mxu0 0.0
    %102 = vmatpush2.msra.mxu0 0.0
    %103 = vmatprep.subr.mxu0 0.0
    %104 = vmatpush2.msra.mxu0 0.0
    %105 = vmatprep.subr.mxu0 0.0
    %106 = vmatpush2.msra.mxu0 0.0
    %107 = vmatprep.subr.mxu0 0.0
    %108 = vmatpush2.msra.mxu0 0.0
    %109 = vmatprep.subr.mxu0 0.0
    %110 = vmatpush2.msra.mxu0 0.0
    %111 = vmatprep.subr.mxu0 0.0
    %112 = vmatpush2.msra.mxu0 0.0
    %113 = vmatprep.subr.mxu0 0.0
    %114 = vmatpush2.msra.mxu0 0.0
    %115 = vmatprep.subr.mxu0 0.0
    %116 = vmatpush2.msra.mxu0 0.0
    %117 = vmatprep.subr.mxu0 0.0
    %118 = vmatpush2.msra.mxu0 0.0
    %119 = vmatprep.subr.mxu0 0.0
    %120 = vmatpush2.msra.mxu0 0.0
    %121 = vmatprep.subr.mxu0 0.0
    %122 = vmatpush2.msra.mxu0 0.0
    %123 = vmatprep.subr.mxu0 0.0
    %124 = vmatpush2.msra.mxu0 0.0
    %125 = vmatprep.subr.mxu0 0.0
    %126 = vmatpush2.msra.mxu0 0.0
    %127 = vmatprep.subr.mxu0 0.0
    %128 = vmatpush2.msra.mxu0 0.0
    %129 = vmatprep.subr.mxu0 0.0
    %130 = vmatpush2.msra.mxu0 0.0
    %131 = vmatprep.mubr.f32.mxu0 0.0
    %132 = vmatmul.mubr.f32.gmra.mxu0 %v65
    %v133 = vpop.f32.mrf.mxu0
    %v134 = vadd.f32 %v61, %v133
    %v135 = vpop.f32.mrf.mxu0
    %136 = vdwg.mxu0
    %v137 = vmax.f32 %v134, 0.0
    %v138 = vld [vmem:[%s3] sm:$0xff]
    %v139 = vld [vmem:[%s3 + $0x8] sm:$0xff]
    %v140 = vld [vmem:[%s3 + $0x10] sm:$0xff]
    %v141 = vld [vmem:[%s3 + $0x18] sm:$0xff]
    %v142 = vld [vmem:[#allocation5] sm:$0x1]
    %v144 = vlaneseq
    %v145 = vshrl.u32 %v144, 7
    %v146 = vsub.s32 0, %v145
    %v147 = vrot.slane %v142, %v146
    %vm149 = vcmask 261120
    %v151 = vsel %vm149, %v137, 0
    %153 = vmatprep.subr.mxu0 0.0
    %154 = vmatpush1.msra.mxu0 0.0
    %155 = vmatprep.subr.mxu0 0.0
    %156 = vmatpush1.msra.mxu0 0.0
    %157 = vmatprep.subr.mxu0 0.0
    %158 = vmatpush1.msra.mxu0 0.0
    %159 = vmatprep.subr.mxu0 0.0
    %160 = vmatpush1.msra.mxu0 0.0
    %161 = vmatprep.subr.mxu0 0.0
    %162 = vmatpush1.msra.mxu0 0.0
    %163 = vmatprep.subr.mxu0 0.0
    %164 = vmatpush1.msra.mxu0 0.0
    %165 = vmatprep.subr.mxu0 0.0
    %166 = vmatpush1.msra.mxu0 0.0
    %167 = vmatprep.subr.mxu0 0.0
    %168 = vmatpush1.msra.mxu0 0.0
    %169 = vmatprep.subr.mxu0 0.0
    %170 = vmatpush1.msra.mxu0 0.0
    %171 = vmatprep.subr.mxu0 0.0
    %172 = vmatpush1.msra.mxu0 0.0
    %173 = vmatprep.subr.mxu0 0.0
    %174 = vmatpush1.msra.mxu0 0.0
    %175 = vmatprep.subr.mxu0 0.0
    %176 = vmatpush1.msra.mxu0 0.0
    %177 = vmatprep.subr.mxu0 0.0
    %178 = vmatpush1.msra.mxu0 %v141
    %179 = vmatprep.subr.mxu0 0.0
    %180 = vmatpush1.msra.mxu0 %v140
    %181 = vmatprep.subr.mxu0 0.0
    %182 = vmatpush1.msra.mxu0 %v139
    %183 = vmatprep.subr.mxu0 0.0
    %184 = vmatpush1.msra.mxu0 %v138
    %185 = vmatprep.subr.mxu0 0.0
    %186 = vmatpush2.msra.mxu0 0.0
    %187 = vmatprep.subr.mxu0 0.0
    %188 = vmatpush2.msra.mxu0 0.0
    %189 = vmatprep.subr.mxu0 0.0
    %190 = vmatpush2.msra.mxu0 0.0
    %191 = vmatprep.subr.mxu0 0.0
    %192 = vmatpush2.msra.mxu0 0.0
    %193 = vmatprep.subr.mxu0 0.0
    %194 = vmatpush2.msra.mxu0 0.0
    %195 = vmatprep.subr.mxu0 0.0
    %196 = vmatpush2.msra.mxu0 0.0
    %197 = vmatprep.subr.mxu0 0.0
    %198 = vmatpush2.msra.mxu0 0.0
    %199 = vmatprep.subr.mxu0 0.0
    %200 = vmatpush2.msra.mxu0 0.0
    %201 = vmatprep.subr.mxu0 0.0
    %202 = vmatpush2.msra.mxu0 0.0
    %203 = vmatprep.subr.mxu0 0.0
    %204 = vmatpush2.msra.mxu0 0.0
    %205 = vmatprep.subr.mxu0 0.0
    %206 = vmatpush2.msra.mxu0 0.0
    %207 = vmatprep.subr.mxu0 0.0
    %208 = vmatpush2.msra.mxu0 0.0
    %209 = vmatprep.subr.mxu0 0.0
    %210 = vmatpush2.msra.mxu0 0.0
    %211 = vmatprep.subr.mxu0 0.0
    %212 = vmatpush2.msra.mxu0 0.0
    %213 = vmatprep.subr.mxu0 0.0
    %214 = vmatpush2.msra.mxu0 0.0
    %215 = vmatprep.subr.mxu0 0.0
    %216 = vmatpush2.msra.mxu0 0.0
    %217 = vmatprep.mubr.f32.mxu0 0.0
    %218 = vmatmul.mubr.f32.gmra.mxu0 %v151
    %v219 = vpop.f32.mrf.mxu0
    %v220 = vadd.f32 %v147, %v219
    %v221 = vpop.f32.mrf.mxu0
    %222 = vdwg.mxu0
    %v223 = vmax.f32 %v220, 0.0
    %v224 = vld [vmem:[%s5] sm:$0xff]
    %v225 = vld [vmem:[%s5 + $0x8] sm:$0xff]
    %v226 = vld [vmem:[%s5 + $0x10] sm:$0xff]
    %v227 = vld [vmem:[%s5 + $0x18] sm:$0xff]
    %v228 = vld [vmem:[%s6] sm:$0x1]
    %v230 = vlaneseq
    %v231 = vshrl.u32 %v230, 7
    %v232 = vsub.s32 0, %v231
    %v233 = vrot.slane %v228, %v232
    %v236 = vsel %vm149, %v223, 0
    %238 = vmatprep.subr.mxu0 0.0
    %239 = vmatpush1.msra.mxu0 0.0
    %240 = vmatprep.subr.mxu0 0.0
    %241 = vmatpush1.msra.mxu0 0.0
    %242 = vmatprep.subr.mxu0 0.0
    %243 = vmatpush1.msra.mxu0 0.0
    %244 = vmatprep.subr.mxu0 0.0
    %245 = vmatpush1.msra.mxu0 0.0
    %246 = vmatprep.subr.mxu0 0.0
    %247 = vmatpush1.msra.mxu0 0.0
    %248 = vmatprep.subr.mxu0 0.0
    %249 = vmatpush1.msra.mxu0 0.0
    %250 = vmatprep.subr.mxu0 0.0
    %251 = vmatpush1.msra.mxu0 0.0
    %252 = vmatprep.subr.mxu0 0.0
    %253 = vmatpush1.msra.mxu0 0.0
    %254 = vmatprep.subr.mxu0 0.0
    %255 = vmatpush1.msra.mxu0 0.0
    %256 = vmatprep.subr.mxu0 0.0
    %257 = vmatpush1.msra.mxu0 0.0
    %258 = vmatprep.subr.mxu0 0.0
    %259 = vmatpush1.msra.mxu0 0.0
    %260 = vmatprep.subr.mxu0 0.0
    %261 = vmatpush1.msra.mxu0 0.0
    %262 = vmatprep.subr.mxu0 0.0
    %263 = vmatpush1.msra.mxu0 %v227
    %264 = vmatprep.subr.mxu0 0.0
    %265 = vmatpush1.msra.mxu0 %v226
    %266 = vmatprep.subr.mxu0 0.0
    %267 = vmatpush1.msra.mxu0 %v225
    %268 = vmatprep.subr.mxu0 0.0
    %269 = vmatpush1.msra.mxu0 %v224
    %270 = vmatprep.subr.mxu0 0.0
    %271 = vmatpush2.msra.mxu0 0.0
    %272 = vmatprep.subr.mxu0 0.0
    %273 = vmatpush2.msra.mxu0 0.0
    %274 = vmatprep.subr.mxu0 0.0
    %275 = vmatpush2.msra.mxu0 0.0
    %276 = vmatprep.subr.mxu0 0.0
    %277 = vmatpush2.msra.mxu0 0.0
    %278 = vmatprep.subr.mxu0 0.0
    %279 = vmatpush2.msra.mxu0 0.0
    %280 = vmatprep.subr.mxu0 0.0
    %281 = vmatpush2.msra.mxu0 0.0
    %282 = vmatprep.subr.mxu0 0.0
    %283 = vmatpush2.msra.mxu0 0.0
    %284 = vmatprep.subr.mxu0 0.0
    %285 = vmatpush2.msra.mxu0 0.0
    %286 = vmatprep.subr.mxu0 0.0
    %287 = vmatpush2.msra.mxu0 0.0
    %288 = vmatprep.subr.mxu0 0.0
    %289 = vmatpush2.msra.mxu0 0.0
    %290 = vmatprep.subr.mxu0 0.0
    %291 = vmatpush2.msra.mxu0 0.0
    %292 = vmatprep.subr.mxu0 0.0
    %293 = vmatpush2.msra.mxu0 0.0
    %294 = vmatprep.subr.mxu0 0.0
    %295 = vmatpush2.msra.mxu0 0.0
    %296 = vmatprep.subr.mxu0 0.0
    %297 = vmatpush2.msra.mxu0 0.0
    %298 = vmatprep.subr.mxu0 0.0
    %299 = vmatpush2.msra.mxu0 0.0
    %300 = vmatprep.subr.mxu0 0.0
    %301 = vmatpush2.msra.mxu0 0.0
    %302 = vmatprep.mubr.f32.mxu0 0.0
    %303 = vmatmul.mubr.f32.gmra.mxu0 %v236
    %v304 = vpop.f32.mrf.mxu0
    %v305 = vadd.f32 %v233, %v304
    %v306 = vpop.f32.mrf.mxu0
    %307 = vdwg.mxu0
    %vm308 = vcmask 64512
    %309 = vst.msk [vmem:[#allocation7] sm:$0xff] %vm308, %v305
    // Predicated region
    $region38: #{tpu_custom_call.1} parent=1 // pred_check
      _
    $region39: #{tpu_custom_call.1} parent=1 // pred_check_branch
      %311 = sbr.rel (0) target = $region41
    $region40: #{tpu_custom_call.1} parent=1 // pred_region
      %s313 = ssub.s32 128, 128
      %314 = vsyncadd [#allocation4], %s313
      %s316 = sshll.u32 [#allocation7], 4
      %s317 = int_to_ptr.vmem [resolvable:$true] %s316
      %319 = dma.vmem_to_hbm [thread:$0]  %s317, 128, %s7, [#allocation4]
    $region41: #{tpu_custom_call.1} parent=1 // pred_fallthru
      _
    // Predicated region
    $region42: #{tpu_custom_call.1} parent=1 // pred_check
      _
    $region43: #{tpu_custom_call.1} parent=1 // pred_check_branch
      %321 = sbr.rel (0) target = $region45
    $region44: #{tpu_custom_call.1} parent=1 // pred_region
      %322 = dma.done [#allocation4], 128
    $region45: #{tpu_custom_call.1} parent=1 // pred_fallthru
      _
    %323 = vsyncpa [#allocation3], 1
    %324 = vsyncpa [#allocation6], 1
    %325 = vsyncpa [#allocation4], 1

</llo_original>
